<compile_context>
chip_gen: v7x
topology: tpu7x:2x2x1
jax: 0.10.0
libtpu: 0.0.40
codegen_flags: <defaults>
</compile_context>

<pallas_src>
import jax
import jax.numpy as jnp
from jax.experimental import pallas as pl
from jax.experimental.pallas import tpu as pltpu


def _fused_kernel_n1(x1_ref, x2row_ref, consts_ref, out_ref):
    # x1: (M, K), x2row: (1, K), consts: (2, 2F) [row 0 = wf_dup, row 1 = b_dup]
    # m = x1 @ x2  done as VPU multiply + XLU lane-reduce (no MXU).
    m = jnp.sum(x1_ref[...] * x2row_ref[...], axis=-1, keepdims=True)   # (M, 1)
    w_row = consts_ref[0:1, :]                                          # (1, 2F)
    b_row = consts_ref[1:2, :]                                          # (1, 2F)
    # VPU outer-product + bias; single full-block store.
    out_ref[...] = (m * w_row + b_row).astype(out_ref.dtype)


def _fused_kernel_general(x1_ref, x2_ref, consts_ref, out_ref):
    # x1: (M, K), x2: (K, N), consts: (N+1, 2F) [rows 0..N-1 = wf_dup, row N = b_dup]
    n = x2_ref.shape[1]
    m = jnp.dot(x1_ref[...], x2_ref[...],
                preferred_element_type=jnp.float32)                     # (M, N) MXU
    wf = consts_ref[0:n, :]                                             # (N, 2F)
    b = consts_ref[n:n + 1, :]                                          # (1, 2F)
    t = jnp.dot(m, wf, preferred_element_type=jnp.float32) + b          # (M, 2F)
    out_ref[...] = t.astype(out_ref.dtype)


def model_forward(x1, x2, w, b, *, use_pallas=True):
    """x1: (M, K) f32, x2: (K, N) f32, w: (F, 2N) f32, b: (F,) f32 -> (M, 2F)."""
    if not use_pallas:
        # Production dispatch for tiny shapes: plain fused XLA beats kernel
        # launch + DMA overhead at ~100 FLOPs.
        return model_forward_ref(x1, x2, w, b)

    M, K = x1.shape
    K2, N = x2.shape
    assert K == K2
    F, in_f = w.shape
    assert in_f == 2 * N

    # Host-side algebraic folds (tiny constants, done once):
    #   [m, m] @ W.T == m @ (W[:, :N] + W[:, N:]).T
    #   out = [t2, t2] == m @ [wf, wf] + [b, b]
    wf = (w[:, :N] + w[:, N:]).T                              # (N, F)
    wf_dup = jnp.concatenate([wf, wf], axis=1)                # (N, 2F)
    b_dup = jnp.concatenate([b, b]).reshape(1, 2 * F)         # (1, 2F)
    consts = jnp.concatenate([wf_dup, b_dup], axis=0)         # (N+1, 2F) single DMA

    if N == 1:
        kernel = _fused_kernel_n1
        x2_in = x2.T                                          # (1, K) row layout
    else:
        kernel = _fused_kernel_general
        x2_in = x2

    vmem_spec = pl.BlockSpec(memory_space=pltpu.MemorySpace.VMEM)

    return pl.pallas_call(
        kernel,
        out_shape=jax.ShapeDtypeStruct((M, 2 * F), jnp.float32),
        in_specs=[vmem_spec, vmem_spec, vmem_spec],
        out_specs=vmem_spec,
    )(x1, x2_in, consts)


def model_forward_ref(x1, x2, w, b):
    m = x1 @ x2
    t1 = jnp.concatenate([m, m], axis=1)
    t2 = t1 @ w.T + b
    t3 = t1 @ w.T + b
    return jnp.concatenate([t2, t3], axis=1)


if __name__ == "__main__":
    key = jax.random.PRNGKey(0)
    k1, k2, kw, kb = jax.random.split(key, 4)

    # Shapes from the source script: x1 = randn(3, 5), x2 = randn(5, 1)
    M, K, N = 3, 5, 1
    F = 6                      # Linear out_features (as declared)
    in_features = 2 * N        # corrected in_features (see TODO above)

    x1 = jax.random.normal(k1, (M, K), dtype=jnp.float32)
    x2 = jax.random.normal(k2, (K, N), dtype=jnp.float32)

    # Deterministic Linear params (uniform in [-1/sqrt(fan_in), 1/sqrt(fan_in)],
    # matching torch.nn.Linear's default init scheme).
    bound = 1.0 / (in_features ** 0.5)
    w = jax.random.uniform(kw, (F, in_features), dtype=jnp.float32,
                           minval=-bound, maxval=bound)
    b = jax.random.uniform(kb, (F,), dtype=jnp.float32,
                           minval=-bound, maxval=bound)

    out = jax.block_until_ready(model_forward(x1, x2, w, b))

    ref = model_forward_ref(x1, x2, w, b)
    assert out.shape == (M, 2 * F), out.shape
    assert jnp.allclose(out, ref, atol=1e-5, rtol=1e-5), "mismatch vs reference"

    print("KERNEL_OK")
</pallas_src>

<mosaic_0001>
module attributes {stable_mosaic.version = 11 : i64} {
  func.func @_fused_kernel_n1(%arg0: memref<3x5xf32, #tpu.memory_space<vmem>>, %arg1: memref<1x5xf32, #tpu.memory_space<vmem>>, %arg2: memref<2x12xf32, #tpu.memory_space<vmem>>, %arg3: memref<3x12xf32, #tpu.memory_space<vmem>>) attributes {dimension_semantics = [], scalar_prefetch = 0 : i64, scratch_operands = 0 : i64, tpu.core_type = #tpu.core_type<tc>} {
    %c0 = arith.constant 0 : index
    %c0_0 = arith.constant 0 : index
    %0 = vector.load %arg0[%c0, %c0_0] : memref<3x5xf32, #tpu.memory_space<vmem>>, vector<3x5xf32>
    %c0_1 = arith.constant 0 : index
    %c0_2 = arith.constant 0 : index
    %1 = vector.load %arg1[%c0_1, %c0_2] : memref<1x5xf32, #tpu.memory_space<vmem>>, vector<1x5xf32>
    %2 = vector.broadcast %1 : vector<1x5xf32> to vector<3x5xf32>
    %3 = arith.mulf %0, %2 : vector<3x5xf32>
    %cst = arith.constant dense<0.000000e+00> : vector<3xf32>
    %4 = vector.multi_reduction <add>, %3, %cst [1] : vector<3x5xf32> to vector<3xf32>
    %5 = vector.shape_cast %4 : vector<3xf32> to vector<3x1xf32>
    %c0_3 = arith.constant 0 : index
    %c0_4 = arith.constant 0 : index
    %6 = vector.load %arg2[%c0_3, %c0_4] : memref<2x12xf32, #tpu.memory_space<vmem>>, vector<1x12xf32>
    %c1 = arith.constant 1 : index
    %c0_5 = arith.constant 0 : index
    %7 = vector.load %arg2[%c1, %c0_5] : memref<2x12xf32, #tpu.memory_space<vmem>>, vector<1x12xf32>
    %8 = vector.broadcast %5 : vector<3x1xf32> to vector<3x12xf32>
    %9 = vector.broadcast %6 : vector<1x12xf32> to vector<3x12xf32>
    %10 = arith.mulf %8, %9 : vector<3x12xf32>
    %11 = vector.broadcast %7 : vector<1x12xf32> to vector<3x12xf32>
    %12 = arith.addf %10, %11 : vector<3x12xf32>
    %c0_6 = arith.constant 0 : index
    %c0_7 = arith.constant 0 : index
    %13 = vector.load %arg3[%c0_6, %c0_7] : memref<3x12xf32, #tpu.memory_space<vmem>>, vector<3x12xf32>
    tpu.vector_store %arg3[%c0_6, %c0_7], %12 {strides = array<i32>} : memref<3x12xf32, #tpu.memory_space<vmem>>, vector<3x12xf32>,
    return
  }
}

</mosaic_0001>

<llo_original>
// kernel: tpu_custom_call.1
$region0: #{tpu_custom_call.1}
  #allocation0 [shape = 'u32[]', space=smem, size = 0x4, offset = 0x4, fixed_abs, tag = 'smem constant byte address 0x4 - core index']
  #allocation1 [shape = 'u32[144,128]{1,0:T(1,128)}', space=vmem, size = 0x12000, scoped, tag = 'internal scratch']
  %s0 = inlined_call_operand.hbm [shape: f32[3,5], index: 0, kind: input, shape index: {}]
  %s1 = inlined_call_operand.vmem [shape: f32[1,5], index: 1, kind: input, shape index: {}]
  %s2 = inlined_call_operand.vmem [shape: f32[2,12], index: 2, kind: input, shape index: {}]
  %s3 = inlined_call_operand.hbm [shape: f32[3,12], index: 3, kind: output, shape index: {}]
  %s4 = sld [smem:[#allocation0]]
  $region26: #{tpu_custom_call.1} parent=0
    _
  %s6 = ssub.s32 1, %s4
  %s7 = scalar_select 0, %s6, %s4
  $region1: #{tpu_custom_call.1} parent=0
    #allocation2 [shape = 'u8[2048]{0}', space=vmem, size = 0x800, scoped, tag = 'input window, operand 0, single buffered']
    #allocation3 [shape = 's32[1]{0}', space=sflag, size = 0x4, scoped, tag = 'scoped memory for tpu_custom_call.1']
    #allocation4 [shape = 's32[1]{0}', space=sflag, size = 0x4, scoped, tag = 'scoped memory for tpu_custom_call.1']
    #allocation5 [shape = 'u8[2048]{0}', space=vmem, size = 0x800, scoped, tag = 'output window, operand 0, single buffered']
    %8 = vsyncpa [#allocation3], 0
    %9 = vsyncpa [#allocation4], 0
    // Predicated region
    $region2: #{tpu_custom_call.1} parent=1 // pred_check
      _
    $region3: #{tpu_custom_call.1} parent=1 // pred_check_branch
      %11 = sbr.rel (0) target = $region5
    $region4: #{tpu_custom_call.1} parent=1 // pred_region
      %s13 = ssub.s32 64, 64
      %14 = vsyncadd [#allocation3], %s13
      %s16 = sshll.u32 [#allocation2], 4
      %s17 = int_to_ptr.vmem [resolvable:$true] %s16
      %19 = dma.hbm_to_vmem [thread:$0]  %s0, 64, %s17, [#allocation3]
    $region5: #{tpu_custom_call.1} parent=1 // pred_fallthru
      _
    // Predicated region
    $region6: #{tpu_custom_call.1} parent=1 // pred_check
      _
    $region7: #{tpu_custom_call.1} parent=1 // pred_check_branch
      %21 = sbr.rel (0) target = $region9
    $region8: #{tpu_custom_call.1} parent=1 // pred_region
      _
    $region9: #{tpu_custom_call.1} parent=1 // pred_fallthru
      _
    // Predicated region
    $region10: #{tpu_custom_call.1} parent=1 // pred_check
      _
    $region11: #{tpu_custom_call.1} parent=1 // pred_check_branch
      %23 = sbr.rel (0) target = $region13
    $region12: #{tpu_custom_call.1} parent=1 // pred_region
      _
    $region13: #{tpu_custom_call.1} parent=1 // pred_fallthru
      _
    // Predicated region
    $region14: #{tpu_custom_call.1} parent=1 // pred_check
      _
    $region15: #{tpu_custom_call.1} parent=1 // pred_check_branch
      %25 = sbr.rel (0) target = $region17
    $region16: #{tpu_custom_call.1} parent=1 // pred_region
      %26 = dma.done [#allocation3], 64
    $region17: #{tpu_custom_call.1} parent=1 // pred_fallthru
      _
    %v27 = vld [vmem:[#allocation2] sm:$0x7]
    %v28 = vld [vmem:[%s1] sm:$0x1]
    %v30 = vlaneseq
    %v31 = vshrl.u32 %v30, 7
    %v32 = vsub.s32 0, %v31
    %v33 = vrot.slane %v28, %v32
    %v35 = vmul.f32 %v27, %v33
    %vm36 = vcmask 34816
    %v37 = vsel %vm36, %v35, 0.0
    %38 = vadd.xlane.f32.xlu0 %v37
    %v39 = vpop.xlane.xlu0 %38
    %v40 = vld [vmem:[%s2] sm:$0x1]
    %v41 = vld [vmem:[%s2 + $0x1] sm:$0x1]
    %v42 = vlaneseq
    %v43 = vshrl.u32 %v42, 7
    %v44 = vsub.s32 0, %v43
    %v45 = vrot.slane %v40, %v44
    %v46 = vmul.f32 %v39, %v45
    %v47 = vlaneseq
    %v48 = vshrl.u32 %v47, 7
    %v49 = vsub.s32 0, %v48
    %v50 = vrot.slane %v41, %v49
    %v51 = vadd.f32 %v46, %v50
    %vm52 = vcmask 92160
    %53 = vst.msk [vmem:[#allocation5] sm:$0x7] %vm52, %v51
    // Predicated region
    $region18: #{tpu_custom_call.1} parent=1 // pred_check
      _
    $region19: #{tpu_custom_call.1} parent=1 // pred_check_branch
      %55 = sbr.rel (0) target = $region21
    $region20: #{tpu_custom_call.1} parent=1 // pred_region
      %s57 = ssub.s32 64, 64
      %58 = vsyncadd [#allocation4], %s57
      %s60 = sshll.u32 [#allocation5], 4
      %s61 = int_to_ptr.vmem [resolvable:$true] %s60
      %63 = dma.vmem_to_hbm [thread:$0]  %s61, 64, %s3, [#allocation4]
    $region21: #{tpu_custom_call.1} parent=1 // pred_fallthru
      _
    // Predicated region
    $region22: #{tpu_custom_call.1} parent=1 // pred_check
      _
    $region23: #{tpu_custom_call.1} parent=1 // pred_check_branch
      %65 = sbr.rel (0) target = $region25
    $region24: #{tpu_custom_call.1} parent=1 // pred_region
      %66 = dma.done [#allocation4], 64
    $region25: #{tpu_custom_call.1} parent=1 // pred_fallthru
      _
    %67 = vsyncpa [#allocation3], 1
    %68 = vsyncpa [#allocation4], 1

</llo_original>
